<compile_context>
chip_gen: v7x
topology: tpu7x:2x2x1
jax: 0.10.0
libtpu: 0.0.40
codegen_flags: <defaults>
</compile_context>

<pallas_src>
import functools

import jax
import jax.numpy as jnp
from jax import lax
from jax.experimental import pallas as pl
from jax.experimental.pallas import tpu as pltpu


def _intra_loss_kernel(f_ref, c_ref, caux_ref, clabel_ref, out_ref, *,
                       num_classes, batch_size, block_rows):
    # f_ref      : VMEM (TB, D)   feature tile for this grid step (pipelined)
    # c_ref      : VMEM (C, D)    class centers (constant index map -> resident)
    # caux_ref   : VMEM (2, C)    row 0 = ||c||^2, row 1 = 1.0 where class != label
    # clabel_ref : VMEM (1, D)    centers[label] in f32
    # out_ref    : VMEM (1, 8, 128) per-tile partials: [0,0,0]=sum(ratio),
    #                                                  [0,0,1]=sum(correct)
    i = pl.program_id(0)
    f32 = jnp.float32

    f = f_ref[...]                                  # native dtype (bf16 OK on MXU)
    f_f32 = f.astype(f32)

    # Accurate "correct" distance: direct (f - centers[label]) pass -> no
    # cancellation when a feature sits very close to its own center.
    diff = f_f32 - clabel_ref[...]                                  # (TB, D)
    correct = jnp.sqrt(jnp.sum(diff * diff, axis=1, keepdims=True))  # (TB, 1)

    # Distances to ALL centers via one MXU contraction (Gram trick).
    f_sq = jnp.sum(f_f32 * f_f32, axis=1, keepdims=True)            # (TB, 1)
    cross = lax.dot_general(f, c_ref[...], (((1,), (1,)), ((), ())),
                            preferred_element_type=f32)             # (TB, C)
    c_sq = caux_ref[0:1, :]                                         # (1, C)
    not_lbl = caux_ref[1:2, :]                                      # (1, C)
    d2 = jnp.maximum(f_sq + c_sq - 2.0 * cross, 0.0)  # clamp rounding negatives
    dist = jnp.sqrt(d2)                                              # (TB, C)

    # Sum over non-label centers only (label column masked out), then average.
    incorrect = jnp.sum(dist * not_lbl, axis=1, keepdims=True)
    incorrect = incorrect * f32(1.0 / (num_classes - 1))             # (TB, 1)

    # EUP approx reciprocal + one Newton refinement instead of a VPU divide.
    r0 = pl.reciprocal(incorrect, approx=True)
    inv_incorrect = r0 * (2.0 - incorrect * r0)
    ratio = correct * inv_incorrect                                   # (TB, 1)

    # Mask rows past the end of the batch (ragged last tile, no wrapper pad).
    row_ids = i * block_rows + lax.broadcasted_iota(
        jnp.int32, (block_rows, 1), 0)
    valid = row_ids < batch_size
    ratio_sum = jnp.sum(jnp.where(valid, ratio, 0.0))
    correct_sum = jnp.sum(jnp.where(valid, correct, 0.0))

    # Lane-dense partial-sum block for this tile (independent per grid step, so
    # the batch axis can be "parallel" / sharded across v7x's two TensorCores).
    sub = lax.broadcasted_iota(jnp.int32, (1, 8, 128), 1)
    lane = lax.broadcasted_iota(jnp.int32, (1, 8, 128), 2)
    out_ref[...] = jnp.where(
        (sub == 0) & (lane == 0), ratio_sum,
        jnp.where((sub == 0) & (lane == 1), correct_sum,
                  jnp.zeros((1, 8, 128), f32)))


def intra_distance_loss(features, labels, centers, lambda_intra=0.1, *,
                        block_rows=None):
    """features: (B, D); labels: scalar/(1,) int; centers: (C, D) -> scalar f32."""
    b, d = features.shape
    c, dc = centers.shape
    assert d == dc
    assert c > 1, "num_classes must be > 1 (PyTorch forward divides by C-1)"

    f32 = jnp.float32
    lbl = jnp.asarray(labels, jnp.int32).reshape(-1)[0]

    # Grid-invariant aux data, computed once here (not per grid step):
    centers_f32 = centers.astype(f32)
    c_sq = jnp.sum(centers_f32 * centers_f32, axis=1)[None, :]        # (1, C)
    not_lbl = (jnp.arange(c, dtype=jnp.int32)[None, :] != lbl).astype(f32)
    caux = jnp.concatenate([c_sq, not_lbl], axis=0)                    # (2, C)
    clabel = centers_f32[lbl][None, :]                                 # (1, D)
    centers_mxu = centers.astype(features.dtype)      # match MXU operand dtypes

    # Byte-targeted batch tile: big enough to amortize the ~0.35us per-step
    # overhead (>=85% of HBM roofline needs multi-MiB tiles), small enough that
    # the double-buffered stream + resident centers + f32 temporaries fit every
    # generation's VMEM budget.
    itemsize = jnp.dtype(features.dtype).itemsize
    if block_rows is None:
        target_tile_bytes = 2 << 20                    # per feature buffer
        rows = max(8, (target_tile_bytes // (d * itemsize)) // 8 * 8)
    else:
        rows = max(8, (int(block_rows) // 8) * 8)
    if b <= rows:
        tb, grid = b, 1
    else:
        tb, grid = int(rows), int(pl.cdiv(b, int(rows)))

    centers_bytes = c * d * jnp.dtype(centers_mxu.dtype).itemsize
    vmem_bytes = (2 * tb * d * itemsize        # double-buffered feature stream
                  + 2 * centers_bytes          # centers (2 default pipe buffers)
                  + 4 * tb * d * 4             # f32 cast/diff/square temporaries
                  + 2 * tb * 512               # (TB,C)/(TB,1) f32 temporaries
                  + (1 << 20))                 # misc slack
    vmem_limit = int(min(max(vmem_bytes, 16 << 20), 48 << 20))

    kernel = functools.partial(
        _intra_loss_kernel, num_classes=c, batch_size=b, block_rows=tb)

    partials = pl.pallas_call(
        kernel,
        out_shape=jax.ShapeDtypeStruct((grid, 8, 128), f32),
        grid_spec=pltpu.PrefetchScalarGridSpec(
            num_scalar_prefetch=0,
            grid=(grid,),
            in_specs=[
                pl.BlockSpec((tb, d), lambda i: (i, 0)),    # feature tiles
                pl.BlockSpec((c, d), lambda i: (0, 0)),     # centers (resident)
                pl.BlockSpec((2, c), lambda i: (0, 0)),     # [||c||^2 ; !label]
                pl.BlockSpec((1, d), lambda i: (0, 0)),     # centers[label]
            ],
            out_specs=pl.BlockSpec((1, 8, 128), lambda i: (i, 0, 0)),
        ),
        compiler_params=pltpu.CompilerParams(
            dimension_semantics=("parallel",),               # v7x dual-TC sharding
            vmem_limit_bytes=vmem_limit),
    )(features, centers_mxu, caux, clabel)

    ratio_total = jnp.sum(partials[:, 0, 0])
    correct_total = jnp.sum(partials[:, 0, 1])
    return (ratio_total + f32(lambda_intra) * correct_total) / f32(b)


def _reference_loss(features, labels, centers, lambda_intra=0.1):
    # Pure-JAX reference replicating the PyTorch forward exactly.
    num_classes = centers.shape[0]
    lbl = int(jnp.asarray(labels).reshape(-1)[0])
    centers_batch = centers[lbl]
    correct = jnp.linalg.norm(features - centers_batch[None, :], axis=1)
    incorrect = jnp.zeros(features.shape[0], jnp.float32)
    for i in range(num_classes):
        if i != lbl:
            incorrect = incorrect + jnp.linalg.norm(
                features - centers[i][None, :], axis=1)
    incorrect = incorrect / (num_classes - 1)
    ratio = correct / incorrect
    return jnp.mean(ratio) + lambda_intra * jnp.mean(correct)


if __name__ == "__main__":
    num_classes = 4
    feature_dim = 32
    batch = 8
    lambda_intra = 0.1

    key = jax.random.PRNGKey(0)
    k_centers, k_feat, k_feat2 = jax.random.split(key, 3)

    centers = jax.random.normal(k_centers, (num_classes, feature_dim), jnp.float32)
    features = jax.random.normal(k_feat, (batch, feature_dim), jnp.float32)
    labels = jnp.array([2], dtype=jnp.int32)   # single shared label (see note)

    # Single-tile path.
    loss = jax.block_until_ready(
        intra_distance_loss(features, labels, centers, lambda_intra))
    ref = _reference_loss(features, labels, centers, lambda_intra)
    assert jnp.allclose(loss, ref, rtol=1e-4, atol=1e-4), (loss, ref)

    # Multi-tile path with a ragged last tile (no wrapper pad; in-kernel mask).
    features2 = jax.random.normal(k_feat2, (300, feature_dim), jnp.float32)
    loss2 = jax.block_until_ready(
        intra_distance_loss(features2, labels, centers, lambda_intra,
                            block_rows=128))
    ref2 = _reference_loss(features2, labels, centers, lambda_intra)
    assert jnp.allclose(loss2, ref2, rtol=1e-3, atol=1e-3), (loss2, ref2)

    # TODO(synk): update_centers() is a training-time in-place parameter update,
    # not part of the forward pass, so it is intentionally not implemented here.
    print("KERNEL_OK")
</pallas_src>

<mosaic_0001>
module attributes {stable_mosaic.version = 11 : i64} {
  func.func @_intra_loss_kernel(%arg0: i32, %arg1: memref<8x32xf32, #tpu.memory_space<vmem>>, %arg2: memref<4x32xf32, #tpu.memory_space<vmem>>, %arg3: memref<2x4xf32, #tpu.memory_space<vmem>>, %arg4: memref<1x32xf32, #tpu.memory_space<vmem>>, %arg5: memref<1x8x128xf32, #tpu.memory_space<vmem>>) attributes {dimension_semantics = [#tpu.dimension_semantics<parallel>], iteration_bounds = array<i64: 1>, scalar_prefetch = 0 : i64, scratch_operands = 0 : i64, tpu.core_type = #tpu.core_type<tc>, window_params = [{transform_indices = @transform_0, window_bounds = array<i64: 8, 32>}, {pipeline_mode = #tpu.pipeline_mode<synchronous>, transform_indices = @transform_1, window_bounds = array<i64: 4, 32>}, {pipeline_mode = #tpu.pipeline_mode<synchronous>, transform_indices = @transform_2, window_bounds = array<i64: 2, 4>}, {pipeline_mode = #tpu.pipeline_mode<synchronous>, transform_indices = @transform_3, window_bounds = array<i64: 1, 32>}, {transform_indices = @transform_4, window_bounds = array<i64: 1, 8, 128>}]} {
    %c0 = arith.constant 0 : index
    %c0_0 = arith.constant 0 : index
    %0 = vector.load %arg1[%c0, %c0_0] : memref<8x32xf32, #tpu.memory_space<vmem>>, vector<8x32xf32>
    %c0_1 = arith.constant 0 : index
    %c0_2 = arith.constant 0 : index
    %1 = vector.load %arg4[%c0_1, %c0_2] : memref<1x32xf32, #tpu.memory_space<vmem>>, vector<1x32xf32>
    %2 = vector.broadcast %1 : vector<1x32xf32> to vector<8x32xf32>
    %3 = arith.subf %0, %2 : vector<8x32xf32>
    %4 = arith.mulf %3, %3 : vector<8x32xf32>
    %cst = arith.constant dense<0.000000e+00> : vector<8xf32>
    %5 = vector.multi_reduction <add>, %4, %cst [1] : vector<8x32xf32> to vector<8xf32>
    %6 = vector.shape_cast %5 : vector<8xf32> to vector<8x1xf32>
    %7 = math.sqrt %6 : vector<8x1xf32>
    %8 = arith.mulf %0, %0 : vector<8x32xf32>
    %cst_3 = arith.constant dense<0.000000e+00> : vector<8xf32>
    %9 = vector.multi_reduction <add>, %8, %cst_3 [1] : vector<8x32xf32> to vector<8xf32>
    %10 = vector.shape_cast %9 : vector<8xf32> to vector<8x1xf32>
    %c0_4 = arith.constant 0 : index
    %c0_5 = arith.constant 0 : index
    %11 = vector.load %arg2[%c0_4, %c0_5] : memref<4x32xf32, #tpu.memory_space<vmem>>, vector<4x32xf32>
    %cst_6 = arith.constant dense<0.000000e+00> : vector<8x4xf32>
    %12 = tpu.matmul %0, %11, %cst_6 {dimension_numbers = #tpu.dot_dimension_numbers<[1], [1], [0], [0], [0, 0, 1, 0], [], []>} : vector<8x32xf32>, vector<4x32xf32>, vector<8x4xf32> -> vector<8x4xf32>
    %c0_7 = arith.constant 0 : index
    %c0_8 = arith.constant 0 : index
    %13 = vector.load %arg3[%c0_7, %c0_8] : memref<2x4xf32, #tpu.memory_space<vmem>>, vector<1x4xf32>
    %c1 = arith.constant 1 : index
    %c0_9 = arith.constant 0 : index
    %14 = vector.load %arg3[%c1, %c0_9] : memref<2x4xf32, #tpu.memory_space<vmem>>, vector<1x4xf32>
    %15 = vector.broadcast %10 : vector<8x1xf32> to vector<8x4xf32>
    %16 = vector.broadcast %13 : vector<1x4xf32> to vector<8x4xf32>
    %17 = arith.addf %15, %16 : vector<8x4xf32>
    %cst_10 = arith.constant 2.000000e+00 : f32
    %18 = vector.broadcast %cst_10 : f32 to vector<8x4xf32>
    %19 = arith.mulf %18, %12 : vector<8x4xf32>
    %20 = arith.subf %17, %19 : vector<8x4xf32>
    %cst_11 = arith.constant 0.000000e+00 : f32
    %21 = vector.broadcast %cst_11 : f32 to vector<8x4xf32>
    %22 = arith.maximumf %20, %21 : vector<8x4xf32>
    %23 = math.sqrt %22 : vector<8x4xf32>
    %24 = vector.broadcast %14 : vector<1x4xf32> to vector<8x4xf32>
    %25 = arith.mulf %23, %24 : vector<8x4xf32>
    %cst_12 = arith.constant dense<0.000000e+00> : vector<8xf32>
    %26 = vector.multi_reduction <add>, %25, %cst_12 [1] : vector<8x4xf32> to vector<8xf32>
    %27 = vector.shape_cast %26 : vector<8xf32> to vector<8x1xf32>
    %cst_13 = arith.constant 0.333333343 : f32
    %28 = vector.broadcast %cst_13 : f32 to vector<8x1xf32>
    %29 = arith.mulf %27, %28 : vector<8x1xf32>
    %30 = tpu.reciprocal %29 {approx = true} : vector<8x1xf32> -> vector<8x1xf32>
    %31 = arith.mulf %29, %30 : vector<8x1xf32>
    %cst_14 = arith.constant 2.000000e+00 : f32
    %32 = vector.broadcast %cst_14 : f32 to vector<8x1xf32>
    %33 = arith.subf %32, %31 : vector<8x1xf32>
    %34 = arith.mulf %30, %33 : vector<8x1xf32>
    %35 = arith.mulf %7, %34 : vector<8x1xf32>
    %c8_i32 = arith.constant 8 : i32
    %36 = arith.muli %arg0, %c8_i32 : i32
    %37 = tpu.iota {dimensions = array<i32: 0>} : vector<8x1xi32>
    %38 = vector.broadcast %36 : i32 to vector<8x1xi32>
    %39 = arith.addi %38, %37 : vector<8x1xi32>
    %c8_i32_15 = arith.constant 8 : i32
    %40 = vector.broadcast %c8_i32_15 : i32 to vector<8x1xi32>
    %41 = arith.cmpi slt, %39, %40 : vector<8x1xi32>
    %cst_16 = arith.constant 0.000000e+00 : f32
    %42 = vector.broadcast %cst_16 : f32 to vector<8x1xf32>
    %43 = arith.select %41, %35, %42 : vector<8x1xi1>, vector<8x1xf32>
    %44 = vector.shape_cast %43 : vector<8x1xf32> to vector<1x8x1xf32>
    %cst_17 = arith.constant dense<0.000000e+00> : vector<1xf32>
    %45 = vector.multi_reduction <add>, %44, %cst_17 [1, 2] : vector<1x8x1xf32> to vector<1xf32>
    %46 = vector.shape_cast %45 : vector<1xf32> to vector<1x1x1xf32>
    %47 = vector.extract %46[0, 0, 0] : f32 from vector<1x1x1xf32>
    %cst_18 = arith.constant 0.000000e+00 : f32
    %48 = vector.broadcast %cst_18 : f32 to vector<8x1xf32>
    %49 = arith.select %41, %7, %48 : vector<8x1xi1>, vector<8x1xf32>
    %50 = vector.shape_cast %49 : vector<8x1xf32> to vector<1x8x1xf32>
    %cst_19 = arith.constant dense<0.000000e+00> : vector<1xf32>
    %51 = vector.multi_reduction <add>, %50, %cst_19 [1, 2] : vector<1x8x1xf32> to vector<1xf32>
    %52 = vector.shape_cast %51 : vector<1xf32> to vector<1x1x1xf32>
    %53 = vector.extract %52[0, 0, 0] : f32 from vector<1x1x1xf32>
    %54 = tpu.iota {dimensions = array<i32: 1>} : vector<1x8x128xi32>
    %55 = tpu.iota {dimensions = array<i32: 2>} : vector<1x8x128xi32>
    %c0_i32 = arith.constant 0 : i32
    %56 = vector.broadcast %c0_i32 : i32 to vector<1x8x128xi32>
    %57 = arith.cmpi eq, %54, %56 : vector<1x8x128xi32>
    %c0_i32_20 = arith.constant 0 : i32
    %58 = vector.broadcast %c0_i32_20 : i32 to vector<1x8x128xi32>
    %59 = arith.cmpi eq, %55, %58 : vector<1x8x128xi32>
    %60 = arith.andi %57, %59 : vector<1x8x128xi1>
    %c0_i32_21 = arith.constant 0 : i32
    %61 = vector.broadcast %c0_i32_21 : i32 to vector<1x8x128xi32>
    %62 = arith.cmpi eq, %54, %61 : vector<1x8x128xi32>
    %c1_i32 = arith.constant 1 : i32
    %63 = vector.broadcast %c1_i32 : i32 to vector<1x8x128xi32>
    %64 = arith.cmpi eq, %55, %63 : vector<1x8x128xi32>
    %65 = arith.andi %62, %64 : vector<1x8x128xi1>
    %cst_22 = arith.constant 0.000000e+00 : f32
    %66 = vector.broadcast %cst_22 : f32 to vector<1x8x128xf32>
    %67 = vector.broadcast %53 : f32 to vector<1x8x128xf32>
    %68 = arith.select %65, %67, %66 : vector<1x8x128xi1>, vector<1x8x128xf32>
    %69 = vector.broadcast %47 : f32 to vector<1x8x128xf32>
    %70 = arith.select %60, %69, %68 : vector<1x8x128xi1>, vector<1x8x128xf32>
    %c0_23 = arith.constant 0 : index
    %c0_24 = arith.constant 0 : index
    %c0_25 = arith.constant 0 : index
    %71 = vector.load %arg5[%c0_23, %c0_24, %c0_25] : memref<1x8x128xf32, #tpu.memory_space<vmem>>, vector<1x8x128xf32>
    tpu.vector_store %arg5[%c0_23, %c0_24, %c0_25], %70 {strides = array<i32>} : memref<1x8x128xf32, #tpu.memory_space<vmem>>, vector<1x8x128xf32>,
    return
  }
  func.func @transform_0(%arg0: i32) -> (i32, i32) {
    %c0_i32 = arith.constant 0 : i32
    %c0_i32_0 = arith.constant 0 : i32
    return %arg0, %c0_i32 : i32, i32
  }
  func.func @transform_1(%arg0: i32) -> (i32, i32) {
    %c0_i32 = arith.constant 0 : i32
    %c0_i32_0 = arith.constant 0 : i32
    %c0_i32_1 = arith.constant 0 : i32
    return %c0_i32, %c0_i32_0 : i32, i32
  }
  func.func @transform_2(%arg0: i32) -> (i32, i32) {
    %c0_i32 = arith.constant 0 : i32
    %c0_i32_0 = arith.constant 0 : i32
    %c0_i32_1 = arith.constant 0 : i32
    return %c0_i32, %c0_i32_0 : i32, i32
  }
  func.func @transform_3(%arg0: i32) -> (i32, i32) {
    %c0_i32 = arith.constant 0 : i32
    %c0_i32_0 = arith.constant 0 : i32
    %c0_i32_1 = arith.constant 0 : i32
    return %c0_i32, %c0_i32_0 : i32, i32
  }
  func.func @transform_4(%arg0: i32) -> (i32, i32, i32) {
    %c0_i32 = arith.constant 0 : i32
    %c0_i32_0 = arith.constant 0 : i32
    %c0_i32_1 = arith.constant 0 : i32
    return %arg0, %c0_i32, %c0_i32_0 : i32, i32, i32
  }
}

</mosaic_0001>

<llo_original>
// kernel: tpu_custom_call.1
$region0: #{tpu_custom_call.1}
  #allocation0 [shape = 'u32[]', space=smem, size = 0x4, offset = 0x4, fixed_abs, tag = 'smem constant byte address 0x4 - core index']
  #allocation1 [shape = 'u32[144,128]{1,0:T(1,128)}', space=vmem, size = 0x12000, scoped, tag = 'internal scratch']
  %s0 = inlined_call_operand.hbm [shape: f32[8,32], index: 0, kind: input, shape index: {}]
  %s1 = inlined_call_operand.hbm [shape: f32[4,32], index: 1, kind: input, shape index: {}]
  %s2 = inlined_call_operand.vmem [shape: f32[2,4], index: 2, kind: input, shape index: {}]
  %s3 = inlined_call_operand.vmem [shape: f32[1,32], index: 3, kind: input, shape index: {}]
  %s4 = inlined_call_operand.hbm [shape: f32[1,8,128], index: 4, kind: output, shape index: {}]
  %s5 = sld [smem:[#allocation0]]
  $region34: #{tpu_custom_call.1} parent=0
    _
  %s7 = ssub.s32 1, %s5
  %s8 = scalar_select 0, %s7, %s5
  $region1: #{tpu_custom_call.1} parent=0
    #allocation2 [shape = 'u8[4096]{0}', space=vmem, size = 0x1000, scoped, tag = 'input window, operand 0, single buffered']
    #allocation3 [shape = 's32[1]{0}', space=sflag, size = 0x4, scoped, tag = 'scoped memory for tpu_custom_call.1']
    #allocation4 [shape = 's32[1]{0}', space=sflag, size = 0x4, scoped, tag = 'scoped memory for tpu_custom_call.1']
    #allocation5 [shape = 'u8[2048]{0}', space=vmem, size = 0x800, scoped, tag = 'input window, operand 1, single buffered']
    #allocation6 [shape = 's32[1]{0}', space=sflag, size = 0x4, scoped, tag = 'scoped memory for tpu_custom_call.1']
    #allocation7 [shape = 'u8[4096]{0}', space=vmem, size = 0x1000, scoped, tag = 'output window, operand 0, single buffered']
    %9 = vsyncpa [#allocation3], 0
    %10 = vsyncpa [#allocation6], 0
    %11 = vsyncpa [#allocation4], 0
    // Predicated region
    $region2: #{tpu_custom_call.1} parent=1 // pred_check
      _
    $region3: #{tpu_custom_call.1} parent=1 // pred_check_branch
      %13 = sbr.rel (0) target = $region5
    $region4: #{tpu_custom_call.1} parent=1 // pred_region
      %s15 = ssub.s32 128, 128
      %16 = vsyncadd [#allocation3], %s15
      %s18 = sshll.u32 [#allocation2], 4
      %s19 = int_to_ptr.vmem [resolvable:$true] %s18
      %21 = dma.hbm_to_vmem [thread:$0]  %s0, 128, %s19, [#allocation3]
    $region5: #{tpu_custom_call.1} parent=1 // pred_fallthru
      _
    // Predicated region
    $region6: #{tpu_custom_call.1} parent=1 // pred_check
      _
    $region7: #{tpu_custom_call.1} parent=1 // pred_check_branch
      %23 = sbr.rel (0) target = $region9
    $region8: #{tpu_custom_call.1} parent=1 // pred_region
      %s25 = ssub.s32 64, 64
      %26 = vsyncadd [#allocation6], %s25
      %s28 = sshll.u32 [#allocation5], 4
      %s29 = int_to_ptr.vmem [resolvable:$true] %s28
      %31 = dma.hbm_to_vmem [thread:$0]  %s1, 64, %s29, [#allocation6]
    $region9: #{tpu_custom_call.1} parent=1 // pred_fallthru
      _
    // Predicated region
    $region10: #{tpu_custom_call.1} parent=1 // pred_check
      _
    $region11: #{tpu_custom_call.1} parent=1 // pred_check_branch
      %33 = sbr.rel (0) target = $region13
    $region12: #{tpu_custom_call.1} parent=1 // pred_region
      _
    $region13: #{tpu_custom_call.1} parent=1 // pred_fallthru
      _
    // Predicated region
    $region14: #{tpu_custom_call.1} parent=1 // pred_check
      _
    $region15: #{tpu_custom_call.1} parent=1 // pred_check_branch
      %35 = sbr.rel (0) target = $region17
    $region16: #{tpu_custom_call.1} parent=1 // pred_region
      _
    $region17: #{tpu_custom_call.1} parent=1 // pred_fallthru
      _
    // Predicated region
    $region18: #{tpu_custom_call.1} parent=1 // pred_check
      _
    $region19: #{tpu_custom_call.1} parent=1 // pred_check_branch
      %37 = sbr.rel (0) target = $region21
    $region20: #{tpu_custom_call.1} parent=1 // pred_region
      %38 = dma.done [#allocation3], 128
    $region21: #{tpu_custom_call.1} parent=1 // pred_fallthru
      _
    // Predicated region
    $region22: #{tpu_custom_call.1} parent=1 // pred_check
      _
    $region23: #{tpu_custom_call.1} parent=1 // pred_check_branch
      %40 = sbr.rel (0) target = $region25
    $region24: #{tpu_custom_call.1} parent=1 // pred_region
      %41 = dma.done [#allocation6], 64
    $region25: #{tpu_custom_call.1} parent=1 // pred_fallthru
      _
    %v42 = vld [vmem:[#allocation2] sm:$0xff]
    %v43 = vld [vmem:[%s3] sm:$0x1]
    %v45 = vlaneseq
    %v46 = vshrl.u32 %v45, 7
    %v47 = vsub.s32 0, %v46
    %v48 = vrot.slane %v43, %v47
    %v50 = vsub.f32 %v42, %v48
    %v51 = vmul.f32 %v50, %v50
    %vm52 = vcmask 261120
    %v53 = vsel %vm52, %v51, 0.0
    %54 = vadd.xlane.f32.xlu0 %v53
    %v55 = vpop.xlane.xlu0 %54
    %v56 = vrsqrt.pop %v55
    %v57 = vmul.f32 %v55, %v56
    %vm58 = vcmp.eq.f32.partialorder %v55, inf
    %v59 = vsel %vm58, %v55, %v57
    %vm60 = vcmp.eq.f32.partialorder %v55, 0.0
    %v61 = vand.u32 %v55, 2147483648
    %v62 = vsel %vm60, %v61, %v59
    %v63 = vmul.f32 %v42, %v42
    %v64 = vsel %vm52, %v63, 0.0
    %65 = vadd.xlane.f32.xlu0 %v64
    %v66 = vpop.xlane.xlu0 %65
    %v67 = vld [vmem:[#allocation5] sm:$0xf]
    %v69 = vsel %vm52, %v42, 0
    %v72 = vsel %vm52, %v67, 0
    %74 = vmatprep.subr.mxu0 0.0
    %75 = vmatpush1.xpose.msra.mxu0 %v72
    %76 = vmatprep.subr.mxu0 0.0
    %77 = vmatpush1.xpose.msra.mxu0 0.0
    %78 = vmatprep.subr.mxu0 0.0
    %79 = vmatpush1.xpose.msra.mxu0 0.0
    %80 = vmatprep.subr.mxu0 0.0
    %81 = vmatpush1.xpose.msra.mxu0 0.0
    %82 = vmatprep.subr.mxu0 0.0
    %83 = vmatpush1.xpose.msra.mxu0 0.0
    %84 = vmatprep.subr.mxu0 0.0
    %85 = vmatpush1.xpose.msra.mxu0 0.0
    %86 = vmatprep.subr.mxu0 0.0
    %87 = vmatpush1.xpose.msra.mxu0 0.0
    %88 = vmatprep.subr.mxu0 0.0
    %89 = vmatpush1.xpose.msra.mxu0 0.0
    %90 = vmatprep.subr.mxu0 0.0
    %91 = vmatpush1.xpose.msra.mxu0 0.0
    %92 = vmatprep.subr.mxu0 0.0
    %93 = vmatpush1.xpose.msra.mxu0 0.0
    %94 = vmatprep.subr.mxu0 0.0
    %95 = vmatpush1.xpose.msra.mxu0 0.0
    %96 = vmatprep.subr.mxu0 0.0
    %97 = vmatpush1.xpose.msra.mxu0 0.0
    %98 = vmatprep.subr.mxu0 0.0
    %99 = vmatpush1.xpose.msra.mxu0 0.0
    %100 = vmatprep.subr.mxu0 0.0
    %101 = vmatpush1.xpose.msra.mxu0 0.0
    %102 = vmatprep.subr.mxu0 0.0
    %103 = vmatpush1.xpose.msra.mxu0 0.0
    %104 = vmatprep.subr.mxu0 0.0
    %105 = vmatpush1.xpose.msra.mxu0 0.0
    %106 = vmatprep.subr.mxu0 0.0
    %107 = vmatpush1.xpose.msra.mxu0 0.0
    %108 = vmatprep.subr.mxu0 0.0
    %109 = vmatpush1.xpose.msra.mxu0 0.0
    %110 = vmatprep.subr.mxu0 0.0
    %111 = vmatpush1.xpose.msra.mxu0 0.0
    %112 = vmatprep.subr.mxu0 0.0
    %113 = vmatpush1.xpose.msra.mxu0 0.0
    %114 = vmatprep.subr.mxu0 0.0
    %115 = vmatpush1.xpose.msra.mxu0 0.0
    %116 = vmatprep.subr.mxu0 0.0
    %117 = vmatpush1.xpose.msra.mxu0 0.0
    %118 = vmatprep.subr.mxu0 0.0
    %119 = vmatpush1.xpose.msra.mxu0 0.0
    %120 = vmatprep.subr.mxu0 0.0
    %121 = vmatpush1.xpose.msra.mxu0 0.0
    %122 = vmatprep.subr.mxu0 0.0
    %123 = vmatpush1.xpose.msra.mxu0 0.0
    %124 = vmatprep.subr.mxu0 0.0
    %125 = vmatpush1.xpose.msra.mxu0 0.0
    %126 = vmatprep.subr.mxu0 0.0
    %127 = vmatpush1.xpose.msra.mxu0 0.0
    %128 = vmatprep.subr.mxu0 0.0
    %129 = vmatpush1.xpose.msra.mxu0 0.0
    %130 = vmatprep.subr.mxu0 0.0
    %131 = vmatpush1.xpose.msra.mxu0 0.0
    %132 = vmatprep.subr.mxu0 0.0
    %133 = vmatpush1.xpose.msra.mxu0 0.0
    %134 = vmatprep.subr.mxu0 0.0
    %135 = vmatpush1.xpose.msra.mxu0 0.0
    %136 = vmatprep.subr.mxu0 0.0
    %137 = vmatpush1.xpose.msra.mxu0 0.0
    %138 = vmatprep.mubr.f32.mxu0 0.0
    %139 = vmatmul.mubr.f32.gmra.mrb[0].mxu0 %v69
    %v140 = vpop.f32.mrb[0].mxu0
    %v141 = vadd.f32 0.0, %v140
    %v142 = vpop.f32.mrb[0].mxu0
    %143 = vdwg.mxu0
    %v144 = vld [vmem:[%s2] sm:$0x1]
    %v145 = vld [vmem:[%s2 + $0x1] sm:$0x1]
    %v146 = vlaneseq
    %v147 = vshrl.u32 %v146, 7
    %v148 = vsub.s32 0, %v147
    %v149 = vrot.slane %v144, %v148
    %v150 = vadd.f32 %v66, %v149
    %v151 = vmul.f32 %v141, 2.0
    %v152 = vsub.f32 %v150, %v151
    %v153 = vmax.f32 %v152, 0.0
    %v154 = vrsqrt.pop %v153
    %v155 = vmul.f32 %v153, %v154
    %vm156 = vcmp.eq.f32.partialorder %v153, inf
    %v157 = vsel %vm156, %v153, %v155
    %vm158 = vcmp.eq.f32.partialorder %v153, 0.0
    %v159 = vand.u32 %v153, 2147483648
    %v160 = vsel %vm158, %v159, %v157
    %v161 = vlaneseq
    %v162 = vshrl.u32 %v161, 7
    %v163 = vsub.s32 0, %v162
    %v164 = vrot.slane %v145, %v163
    %v165 = vmul.f32 %v160, %v164
    %vm166 = vcmask 31744
    %v167 = vsel %vm166, %v165, 0.0
    %168 = vadd.xlane.f32.xlu0 %v167
    %v169 = vpop.xlane.xlu0 %168
    %v170 = vmul.f32 %v169, 0.33333334
    %v171 = vrcp.pop %v170
    %v172 = vmul.f32 %v170, %v171
    %v173 = vsub.f32 2.0, %v172
    %v174 = vmul.f32 %v171, %v173
    %v175 = vmul.f32 %v62, %v174
    %s176 = smul.u32 0, 8
    %v177 = vlaneseq
    %v178 = vshrl.u32 %v177, 7
    %v179 = vstv %s176
    %v180 = vadd.s32 %v179, %v178
    %vm181 = vcmp.lt.s32.totalorder %v180, 8
    %v182 = vsel %vm181, %v175, 0.0
    %vm183 = vcmask 7168
    %v184 = vsel %vm183, %v182, 0.0
    %185 = vadd.xlane.f32.xlu0 %v184
    %v186 = vpop.xlane.xlu0 %185
    %v187 = vrot.slane %v186, 4
    %v188 = vadd.f32 %v186, %v187
    %v189 = vrot.slane %v188, 2
    %v190 = vadd.f32 %v188, %v189
    %v191 = vrot.slane %v190, 1
    %v192 = vadd.f32 %v190, %v191
    %s193 = vtos %v192
    %v194 = vsel %vm181, %v62, 0.0
    %v195 = vsel %vm183, %v194, 0.0
    %196 = vadd.xlane.f32.xlu0 %v195
    %v197 = vpop.xlane.xlu0 %196
    %v198 = vrot.slane %v197, 4
    %v199 = vadd.f32 %v197, %v198
    %v200 = vrot.slane %v199, 2
    %v201 = vadd.f32 %v199, %v200
    %v202 = vrot.slane %v201, 1
    %v203 = vadd.f32 %v201, %v202
    %s204 = vtos %v203
    %v205 = vlaneseq
    %v206 = vand.u32 %v205, 127
    %vm207 = vcmp.eq.s32.totalorder %v178, 0
    %vm208 = vcmp.eq.s32.totalorder %v206, 0
    %vm209 = vmand %vm207, %vm208
    %vm210 = vcmp.eq.s32.totalorder %v206, 1
    %vm211 = vmand %vm207, %vm210
    %v212 = vstv %s204
    %v213 = vsel %vm211, %v212, 0.0
    %v214 = vstv %s193
    %v215 = vsel %vm209, %v214, %v213
    %216 = vst [vmem:[#allocation7] sm:$0xff] %v215
    // Predicated region
    $region26: #{tpu_custom_call.1} parent=1 // pred_check
      _
    $region27: #{tpu_custom_call.1} parent=1 // pred_check_branch
      %218 = sbr.rel (0) target = $region29
    $region28: #{tpu_custom_call.1} parent=1 // pred_region
      %s220 = ssub.s32 128, 128
      %221 = vsyncadd [#allocation4], %s220
      %s223 = sshll.u32 [#allocation7], 4
      %s224 = int_to_ptr.vmem [resolvable:$true] %s223
      %226 = dma.vmem_to_hbm [thread:$0]  %s224, 128, %s4, [#allocation4]
    $region29: #{tpu_custom_call.1} parent=1 // pred_fallthru
      _
    // Predicated region
    $region30: #{tpu_custom_call.1} parent=1 // pred_check
      _
    $region31: #{tpu_custom_call.1} parent=1 // pred_check_branch
      %228 = sbr.rel (0) target = $region33
    $region32: #{tpu_custom_call.1} parent=1 // pred_region
      %229 = dma.done [#allocation4], 128
    $region33: #{tpu_custom_call.1} parent=1 // pred_fallthru
      _
    %230 = vsyncpa [#allocation3], 1
    %231 = vsyncpa [#allocation6], 1
    %232 = vsyncpa [#allocation4], 1

</llo_original>
